<compile_context>
chip_gen: v6e
topology: v6e:2x2x1
jax: 0.10.0
libtpu: 0.0.40
codegen_flags: <defaults>
</compile_context>

<pallas_src>
from functools import partial

import numpy as np
import jax
import jax.numpy as jnp
from jax.experimental import pallas as pl
from jax.experimental.pallas import tpu as pltpu

REP_THR = 0.1          # self.rep_thr
KERNEL_SIZE = 5        # MaxPool2d(kernel_size=5, stride=1, padding=2)
PAD = KERNEL_SIZE // 2 # 2
_NEG = -jnp.inf        # MaxPool2d implicit padding value


def _round_up(x, m):
    return (x + m - 1) // m * m


def _nms_mask_kernel(x_ref, mask_ref):
    """x_ref: (R, Wp) f32 block (R = Bt*Hp rows, Wp lane-dense) ->
    mask_ref: (R, Wp) int8 keypoint mask (1 = keep).

    Separable 5x5 max: 5-tap running max along lanes (W), then 5-tap running
    max along sublanes (H) of that result.  All rolls wrap only into -inf
    guard rows/columns provided by the wrapper, so no validity masks are
    needed.  Shift amounts use the positive complement so every shift is
    non-negative; the window is symmetric so roll direction does not matter.
    """
    x = x_ref[...]
    R, Wp = x.shape

    # Pass 1: max over columns j-2..j+2 (lane axis, XLU rotates).
    m = x
    for d in (1, 2):
        m = jnp.maximum(m, pltpu.roll(x, d, axis=1))          # col j-d
        m = jnp.maximum(m, pltpu.roll(x, Wp - d, axis=1))      # col j+d
    # Pass 2: max over rows i-2..i+2 (sublane axis) of the pass-1 result.
    lmax = m
    for d in (1, 2):
        lmax = jnp.maximum(lmax, pltpu.roll(m, d, axis=0))     # row i-d
        lmax = jnp.maximum(lmax, pltpu.roll(m, R - d, axis=0))  # row i+d

    keep = (x == lmax) & (x > REP_THR)
    mask_ref[...] = keep.astype(jnp.int8)


def _plan_tiles(B, H, W, *, vmem_budget_bytes, target_block_bytes):
    """Pick padded plane dims and images-per-block.

    Targets ~target_block_bytes per block so the grid has several steps
    (DMA/compute overlap + megacore split), capped by a conservative VMEM
    budget that accounts for double-buffered f32 input + int8 output blocks.
    """
    Wp = _round_up(W + PAD, 128)

    def plan(h_align):
        Hp = _round_up(H + PAD, h_align)
        per_image = Hp * Wp * (4 + 1)                       # f32 in + i8 out
        cap = max(1, vmem_budget_bytes // (2 * per_image))  # double-buffered
        tgt = max(1, target_block_bytes // per_image)
        Bt = int(min(B, cap, tgt))
        return Hp, Bt

    Hp, Bt = plan(8)
    if Bt < B:
        # Multi-block: keep the int8 output's per-block sublane extent
        # (Bt * Hp) a multiple of the native int8 tile (32, 128).
        Hp, Bt = plan(32)
    return Wp, Hp, Bt


@partial(jax.jit, static_argnames=("vmem_budget_bytes", "target_block_bytes"))
def nms_mask(score, *, vmem_budget_bytes=8 << 20, target_block_bytes=2 << 20):
    """score: (B, 1, H, W) float -> (B, H, W) int8 keypoint mask."""
    B, C, H, W = score.shape
    assert C == 1, "NonMaxSuppression expects a single-channel score map"
    x = score[:, 0, :, :].astype(jnp.float32)              # (B, H, W)

    Wp, Hp, Bt = _plan_tiles(
        B, H, W,
        vmem_budget_bytes=vmem_budget_bytes,
        target_block_bytes=target_block_bytes,
    )
    n_blocks = -(-B // Bt)
    Bpad = n_blocks * Bt

    # -inf guard padding (batch, rows, cols); padded positions can never pass
    # the (x > REP_THR) test, so they are never selected.
    xp = jnp.pad(
        x,
        ((0, Bpad - B), (0, Hp - H), (0, Wp - W)),
        mode="constant",
        constant_values=_NEG,
    )
    x2d = xp.reshape(Bpad * Hp, Wp)                        # batch folded on sublanes

    rows = Bt * Hp
    # TODO(synk): for B == 1 with planes too large for one VMEM block, an
    # H-tiled grid with a 2-row halo would be needed; not required here.
    mask2d = pl.pallas_call(
        _nms_mask_kernel,
        out_shape=jax.ShapeDtypeStruct((Bpad * Hp, Wp), jnp.int8),
        grid=(n_blocks,),
        in_specs=[pl.BlockSpec((rows, Wp), lambda i: (i, 0))],
        out_specs=pl.BlockSpec((rows, Wp), lambda i: (i, 0)),
        compiler_params=pltpu.CompilerParams(
            dimension_semantics=("parallel",),
            vmem_limit_bytes=32 * 1024 * 1024,
        ),
    )(x2d)

    return mask2d.reshape(Bpad, Hp, Wp)[:B, :H, :W]


def non_max_suppression_forward(score):
    """Full forward: returns (B, pad_val, 2) int64 of (x, y) keypoint coords,
    zero-padded per batch to the max count — same semantics as the PyTorch module."""
    mask = nms_mask(score)
    mask_np = np.asarray(jax.block_until_ready(mask)) > 0
    B = mask_np.shape[0]
    # TODO(synk): the variable-length nonzero + pad-to-dynamic-max has no
    # static-shape Pallas equivalent (data-dependent output shape); it is done
    # host-side exactly as the reference — only the compact int8 mask crosses
    # the D2H boundary.
    pos_batched = [np.flip(np.argwhere(m), axis=-1).astype(np.int64) for m in mask_np]
    pad_val = max((len(p) for p in pos_batched), default=0)
    pos = np.zeros((B, pad_val, 2), dtype=np.int64)
    for b, p in enumerate(pos_batched):
        pos[b, : len(p), :] = p
    return pos


def _ref_mask(score_np, thr=REP_THR, k=KERNEL_SIZE):
    """NumPy reference of the in-kernel compute for validation."""
    B, _, H, W = score_np.shape
    pad = k // 2
    out = np.zeros((B, H, W), dtype=bool)
    for b in range(B):
        x = score_np[b, 0]
        xpad = np.full((H + 2 * pad, W + 2 * pad), -np.inf, dtype=x.dtype)
        xpad[pad:pad + H, pad:pad + W] = x
        lmax = np.full((H, W), -np.inf, dtype=x.dtype)
        for di in range(k):
            for dj in range(k):
                lmax = np.maximum(lmax, xpad[di:di + H, dj:dj + W])
        out[b] = (x == lmax) & (x > thr)
    return out


if __name__ == "__main__":
    key = jax.random.PRNGKey(0)
    B, C, H, W = 2, 1, 16, 16
    score = jax.random.uniform(key, (B, C, H, W), dtype=jnp.float32)

    mask = jax.block_until_ready(nms_mask(score))

    # Validate the Pallas hot path against the NumPy reference.
    ref = _ref_mask(np.asarray(score))
    assert np.array_equal(np.asarray(mask) > 0, ref), "mask mismatch vs reference"

    # Validate the full forward (coords) against the reference-derived packing.
    pos = non_max_suppression_forward(score)
    exp_batched = [np.flip(np.argwhere(m), axis=-1).astype(np.int64) for m in ref]
    exp_pad = max((len(p) for p in exp_batched), default=0)
    expected = np.zeros((B, exp_pad, 2), dtype=np.int64)
    for b, p in enumerate(exp_batched):
        expected[b, : len(p), :] = p
    assert pos.shape == expected.shape and pos.dtype == np.int64
    assert np.array_equal(pos, expected), "coordinate packing mismatch"

    print("KERNEL_OK")
</pallas_src>

<mosaic_0001>
module attributes {stable_mosaic.version = 11 : i64} {
  func.func @_nms_mask_kernel(%arg0: i32, %arg1: memref<48x128xf32, #tpu.memory_space<vmem>>, %arg2: memref<48x128xi8, #tpu.memory_space<vmem>>) attributes {dimension_semantics = [#tpu.dimension_semantics<parallel>], iteration_bounds = array<i64: 1>, scalar_prefetch = 0 : i64, scratch_operands = 0 : i64, tpu.core_type = #tpu.core_type<tc>, window_params = [{transform_indices = @transform_0, window_bounds = array<i64: 48, 128>}, {transform_indices = @transform_1, window_bounds = array<i64: 48, 128>}]} {
    %c0 = arith.constant 0 : index
    %c0_0 = arith.constant 0 : index
    %0 = vector.load %arg1[%c0, %c0_0] : memref<48x128xf32, #tpu.memory_space<vmem>>, vector<48x128xf32>
    %c1_i32 = arith.constant 1 : i32
    %1 = tpu.dynamic_rotate %0 by %c1_i32 dim 1 : vector<48x128xf32>, i32 -> vector<48x128xf32>
    %2 = arith.maximumf %0, %1 : vector<48x128xf32>
    %c127_i32 = arith.constant 127 : i32
    %3 = tpu.dynamic_rotate %0 by %c127_i32 dim 1 : vector<48x128xf32>, i32 -> vector<48x128xf32>
    %4 = arith.maximumf %2, %3 : vector<48x128xf32>
    %c2_i32 = arith.constant 2 : i32
    %5 = tpu.dynamic_rotate %0 by %c2_i32 dim 1 : vector<48x128xf32>, i32 -> vector<48x128xf32>
    %6 = arith.maximumf %4, %5 : vector<48x128xf32>
    %c126_i32 = arith.constant 126 : i32
    %7 = tpu.dynamic_rotate %0 by %c126_i32 dim 1 : vector<48x128xf32>, i32 -> vector<48x128xf32>
    %8 = arith.maximumf %6, %7 : vector<48x128xf32>
    %c1_i32_1 = arith.constant 1 : i32
    %9 = tpu.dynamic_rotate %8 by %c1_i32_1 dim 0 : vector<48x128xf32>, i32 -> vector<48x128xf32>
    %10 = arith.maximumf %8, %9 : vector<48x128xf32>
    %c47_i32 = arith.constant 47 : i32
    %11 = tpu.dynamic_rotate %8 by %c47_i32 dim 0 : vector<48x128xf32>, i32 -> vector<48x128xf32>
    %12 = arith.maximumf %10, %11 : vector<48x128xf32>
    %c2_i32_2 = arith.constant 2 : i32
    %13 = tpu.dynamic_rotate %8 by %c2_i32_2 dim 0 : vector<48x128xf32>, i32 -> vector<48x128xf32>
    %14 = arith.maximumf %12, %13 : vector<48x128xf32>
    %c46_i32 = arith.constant 46 : i32
    %15 = tpu.dynamic_rotate %8 by %c46_i32 dim 0 : vector<48x128xf32>, i32 -> vector<48x128xf32>
    %16 = arith.maximumf %14, %15 : vector<48x128xf32>
    %17 = arith.cmpf oeq, %0, %16 : vector<48x128xf32>
    %cst = arith.constant 1.000000e-01 : f32
    %18 = vector.broadcast %cst : f32 to vector<48x128xf32>
    %19 = arith.cmpf ogt, %0, %18 : vector<48x128xf32>
    %20 = arith.andi %17, %19 : vector<48x128xi1>
    %21 = arith.extui %20 : vector<48x128xi1> to vector<48x128xi8>
    %c0_3 = arith.constant 0 : index
    %c0_4 = arith.constant 0 : index
    %22 = vector.load %arg2[%c0_3, %c0_4] : memref<48x128xi8, #tpu.memory_space<vmem>>, vector<48x128xi8>
    tpu.vector_store %arg2[%c0_3, %c0_4], %21 {strides = array<i32>} : memref<48x128xi8, #tpu.memory_space<vmem>>, vector<48x128xi8>,
    return
  }
  func.func @transform_0(%arg0: i32) -> (i32, i32) {
    %c0_i32 = arith.constant 0 : i32
    %c0_i32_0 = arith.constant 0 : i32
    return %arg0, %c0_i32 : i32, i32
  }
  func.func @transform_1(%arg0: i32) -> (i32, i32) {
    %c0_i32 = arith.constant 0 : i32
    %c0_i32_0 = arith.constant 0 : i32
    return %arg0, %c0_i32 : i32, i32
  }
}

</mosaic_0001>

<llo_original>
// kernel: nms_mask.1
$region0: #{nms_mask.1}
  #allocation0 [shape = 'u32[]', space=smem, size = 0x4, offset = 0x4, fixed_abs, tag = 'smem constant byte address 0x4 - core index']
  #allocation1 [shape = 'u32[144,128]{1,0:T(1,128)}', space=vmem, size = 0x12000, scoped, tag = 'internal scratch']
  %s0 = inlined_call_operand.vmem [shape: f32[48,128], index: 0, kind: input, shape index: {}]
  %s1 = inlined_call_operand.vmem [shape: s8[48,128], index: 1, kind: output, shape index: {}]
  %s2 = sld [smem:[#allocation0]]
  $region14: #{nms_mask.1} parent=0
    _
  %s4 = ssub.s32 1, %s2
  %s5 = scalar_select 0, %s4, %s2
  // Predicated region
  $region2: #{nms_mask.1} parent=0 // pred_check
    _
  $region3: #{nms_mask.1} parent=0 // pred_check_branch
    %7 = sbr.rel (0) target = $region5
  $region4: #{nms_mask.1} parent=0 // pred_region
    _
  $region5: #{nms_mask.1} parent=0 // pred_fallthru
    _
  %v10 = vld [vmem:[%s0] sm:$0xff]
  %v11 = vld [vmem:[%s0 + $0x8] sm:$0xff]
  %v12 = vld [vmem:[%s0 + $0x10] sm:$0xff]
  %v13 = vld [vmem:[%s0 + $0x18] sm:$0xff]
  %v14 = vld [vmem:[%s0 + $0x20] sm:$0xff]
  %v15 = vld [vmem:[%s0 + $0x28] sm:$0xff]
  %16 = vrot.lane.b32.xlu0 %v10, 1
  %v17 = vpop.permute.xlu0 %16
  %18 = vrot.lane.b32.xlu0 %v11, 1
  %v19 = vpop.permute.xlu0 %18
  %20 = vrot.lane.b32.xlu0 %v12, 1
  %v21 = vpop.permute.xlu0 %20
  %22 = vrot.lane.b32.xlu0 %v13, 1
  %v23 = vpop.permute.xlu0 %22
  %24 = vrot.lane.b32.xlu0 %v14, 1
  %v25 = vpop.permute.xlu0 %24
  %26 = vrot.lane.b32.xlu0 %v15, 1
  %v27 = vpop.permute.xlu0 %26
  %v28 = vmax.f32 %v10, %v17
  %v29 = vmax.f32 %v11, %v19
  %v30 = vmax.f32 %v12, %v21
  %v31 = vmax.f32 %v13, %v23
  %v32 = vmax.f32 %v14, %v25
  %v33 = vmax.f32 %v15, %v27
  %34 = vrot.lane.b32.xlu0 %v10, 127
  %v35 = vpop.permute.xlu0 %34
  %36 = vrot.lane.b32.xlu0 %v11, 127
  %v37 = vpop.permute.xlu0 %36
  %38 = vrot.lane.b32.xlu0 %v12, 127
  %v39 = vpop.permute.xlu0 %38
  %40 = vrot.lane.b32.xlu0 %v13, 127
  %v41 = vpop.permute.xlu0 %40
  %42 = vrot.lane.b32.xlu0 %v14, 127
  %v43 = vpop.permute.xlu0 %42
  %44 = vrot.lane.b32.xlu0 %v15, 127
  %v45 = vpop.permute.xlu0 %44
  %v46 = vmax.f32 %v28, %v35
  %v47 = vmax.f32 %v29, %v37
  %v48 = vmax.f32 %v30, %v39
  %v49 = vmax.f32 %v31, %v41
  %v50 = vmax.f32 %v32, %v43
  %v51 = vmax.f32 %v33, %v45
  %52 = vrot.lane.b32.xlu0 %v10, 2
  %v53 = vpop.permute.xlu0 %52
  %54 = vrot.lane.b32.xlu0 %v11, 2
  %v55 = vpop.permute.xlu0 %54
  %56 = vrot.lane.b32.xlu0 %v12, 2
  %v57 = vpop.permute.xlu0 %56
  %58 = vrot.lane.b32.xlu0 %v13, 2
  %v59 = vpop.permute.xlu0 %58
  %60 = vrot.lane.b32.xlu0 %v14, 2
  %v61 = vpop.permute.xlu0 %60
  %62 = vrot.lane.b32.xlu0 %v15, 2
  %v63 = vpop.permute.xlu0 %62
  %v64 = vmax.f32 %v46, %v53
  %v65 = vmax.f32 %v47, %v55
  %v66 = vmax.f32 %v48, %v57
  %v67 = vmax.f32 %v49, %v59
  %v68 = vmax.f32 %v50, %v61
  %v69 = vmax.f32 %v51, %v63
  %70 = vrot.lane.b32.xlu0 %v10, 126
  %v71 = vpop.permute.xlu0 %70
  %72 = vrot.lane.b32.xlu0 %v11, 126
  %v73 = vpop.permute.xlu0 %72
  %74 = vrot.lane.b32.xlu0 %v12, 126
  %v75 = vpop.permute.xlu0 %74
  %76 = vrot.lane.b32.xlu0 %v13, 126
  %v77 = vpop.permute.xlu0 %76
  %78 = vrot.lane.b32.xlu0 %v14, 126
  %v79 = vpop.permute.xlu0 %78
  %80 = vrot.lane.b32.xlu0 %v15, 126
  %v81 = vpop.permute.xlu0 %80
  %v82 = vmax.f32 %v64, %v71
  %v83 = vmax.f32 %v65, %v73
  %v84 = vmax.f32 %v66, %v75
  %v85 = vmax.f32 %v67, %v77
  %v86 = vmax.f32 %v68, %v79
  %v87 = vmax.f32 %v69, %v81
  %v88 = vrot.slane %v82, 7
  %v89 = vrot.slane %v83, 7
  %v90 = vrot.slane %v84, 7
  %v91 = vrot.slane %v85, 7
  %v92 = vrot.slane %v86, 7
  %v93 = vrot.slane %v87, 7
  %v94 = vlaneseq
  %v95 = vshrl.u32 %v94, 7
  %vm96 = vcmp.lt.s32.totalorder %v95, 1
  %v97 = vsel %vm96, %v92, %v93
  %v98 = vsel %vm96, %v91, %v92
  %v99 = vsel %vm96, %v90, %v91
  %v100 = vsel %vm96, %v89, %v90
  %v101 = vsel %vm96, %v88, %v89
  %v102 = vsel %vm96, %v93, %v88
  %v103 = vmax.f32 %v82, %v102
  %v104 = vmax.f32 %v83, %v101
  %v105 = vmax.f32 %v84, %v100
  %v106 = vmax.f32 %v85, %v99
  %v107 = vmax.f32 %v86, %v98
  %v108 = vmax.f32 %v87, %v97
  %v109 = vrot.slane %v82, 1
  %v110 = vrot.slane %v83, 1
  %v111 = vrot.slane %v84, 1
  %v112 = vrot.slane %v85, 1
  %v113 = vrot.slane %v86, 1
  %v114 = vrot.slane %v87, 1
  %vm115 = vcmp.lt.s32.totalorder %v95, 7
  %v116 = vsel %vm115, %v113, %v114
  %v117 = vsel %vm115, %v112, %v113
  %v118 = vsel %vm115, %v111, %v112
  %v119 = vsel %vm115, %v110, %v111
  %v120 = vsel %vm115, %v109, %v110
  %v121 = vsel %vm115, %v114, %v109
  %v122 = vmax.f32 %v103, %v120
  %v123 = vmax.f32 %v104, %v119
  %v124 = vmax.f32 %v105, %v118
  %v125 = vmax.f32 %v106, %v117
  %v126 = vmax.f32 %v107, %v116
  %v127 = vmax.f32 %v108, %v121
  %v128 = vrot.slane %v82, 6
  %v129 = vrot.slane %v83, 6
  %v130 = vrot.slane %v84, 6
  %v131 = vrot.slane %v85, 6
  %v132 = vrot.slane %v86, 6
  %v133 = vrot.slane %v87, 6
  %vm134 = vcmp.lt.s32.totalorder %v95, 2
  %v135 = vsel %vm134, %v132, %v133
  %v136 = vsel %vm134, %v131, %v132
  %v137 = vsel %vm134, %v130, %v131
  %v138 = vsel %vm134, %v129, %v130
  %v139 = vsel %vm134, %v128, %v129
  %v140 = vsel %vm134, %v133, %v128
  %v141 = vmax.f32 %v122, %v140
  %v142 = vmax.f32 %v123, %v139
  %v143 = vmax.f32 %v124, %v138
  %v144 = vmax.f32 %v125, %v137
  %v145 = vmax.f32 %v126, %v136
  %v146 = vmax.f32 %v127, %v135
  %v147 = vrot.slane %v82, 2
  %v148 = vrot.slane %v83, 2
  %v149 = vrot.slane %v84, 2
  %v150 = vrot.slane %v85, 2
  %v151 = vrot.slane %v86, 2
  %v152 = vrot.slane %v87, 2
  %vm153 = vcmp.lt.s32.totalorder %v95, 6
  %v154 = vsel %vm153, %v151, %v152
  %v155 = vsel %vm153, %v150, %v151
  %v156 = vsel %vm153, %v149, %v150
  %v157 = vsel %vm153, %v148, %v149
  %v158 = vsel %vm153, %v147, %v148
  %v159 = vsel %vm153, %v152, %v147
  %v160 = vmax.f32 %v141, %v158
  %v161 = vmax.f32 %v142, %v157
  %v162 = vmax.f32 %v143, %v156
  %v163 = vmax.f32 %v144, %v155
  %v164 = vmax.f32 %v145, %v154
  %v165 = vmax.f32 %v146, %v159
  %vm166 = vcmp.eq.f32.partialorder %v10, %v160
  %vm167 = vcmp.eq.f32.partialorder %v11, %v161
  %vm168 = vcmp.eq.f32.partialorder %v12, %v162
  %vm169 = vcmp.eq.f32.partialorder %v13, %v163
  %vm170 = vcmp.eq.f32.partialorder %v14, %v164
  %vm171 = vcmp.eq.f32.partialorder %v15, %v165
  %vm172 = vcmp.gt.f32.partialorder %v10, 0.1
  %vm173 = vcmp.gt.f32.partialorder %v11, 0.1
  %vm174 = vcmp.gt.f32.partialorder %v12, 0.1
  %vm175 = vcmp.gt.f32.partialorder %v13, 0.1
  %vm176 = vcmp.gt.f32.partialorder %v14, 0.1
  %vm177 = vcmp.gt.f32.partialorder %v15, 0.1
  %vm178 = vmand %vm166, %vm172
  %vm179 = vmand %vm167, %vm173
  %vm180 = vmand %vm168, %vm174
  %vm181 = vmand %vm169, %vm175
  %vm182 = vmand %vm170, %vm176
  %vm183 = vmand %vm171, %vm177
  %vm184 = vmpackc.low %vm179, %vm178
  %vm185 = vmpackc.low %vm181, %vm180
  %vm186 = vmpackc.even %vm185, %vm184
  %vm187 = vmpackc.low %vm183, %vm182
  %vm188 = vmpackc.even %vm187, %vm187
  %v189 = vsel %vm186, 16843009, 0
  %v190 = vsel %vm188, 16843009, 0
  %v191 = vunpack.c.0.s8 %v189
  %v192 = vunpack.c.1.s8 %v189
  %v193 = vunpack.c.2.s8 %v189
  %v194 = vunpack.c.3.s8 %v189
  %v195 = vunpack.c.0.s8 %v190
  %v196 = vunpack.c.1.s8 %v190
  %v197 = vpack.c.b16 %v191, %v191
  %v198 = vpack.c.b8 %v197, %v197
  %v199 = vpack.c.b16 %v192, %v192
  %v200 = vpack.c.b8 %v199, %v199
  %v201 = vpack.c.b16 %v193, %v193
  %v202 = vpack.c.b8 %v201, %v201
  %v203 = vpack.c.b16 %v194, %v194
  %v204 = vpack.c.b8 %v203, %v203
  %v205 = vpack.c.b16 %v195, %v195
  %v206 = vpack.c.b8 %v205, %v205
  %v207 = vpack.c.b16 %v196, %v196
  %v208 = vpack.c.b8 %v207, %v207
  %209 = vst [vmem:[%s1] sm:$0x3] %v198
  %210 = vst [vmem:[%s1 + $0x2] sm:$0x3] %v200
  %211 = vst [vmem:[%s1 + $0x4] sm:$0x3] %v202
  %212 = vst [vmem:[%s1 + $0x6] sm:$0x3] %v204
  %213 = vst [vmem:[%s1 + $0x8] sm:$0x3] %v206
  %214 = vst [vmem:[%s1 + $0xa] sm:$0x3] %v208
  // Predicated region
  $region6: #{nms_mask.1} parent=0 // pred_check
    _
  $region7: #{nms_mask.1} parent=0 // pred_check_branch
    %216 = sbr.rel (0) target = $region9
  $region8: #{nms_mask.1} parent=0 // pred_region
    _
  $region9: #{nms_mask.1} parent=0 // pred_fallthru
    _
  // Predicated region
  $region10: #{nms_mask.1} parent=0 // pred_check
    _
  $region11: #{nms_mask.1} parent=0 // pred_check_branch
    %218 = sbr.rel (0) target = $region13
  $region12: #{nms_mask.1} parent=0 // pred_region
    _
  $region13: #{nms_mask.1} parent=0 // pred_fallthru
    _

</llo_original>
